<compile_context>
chip_gen: v7x
topology: tpu7x:2x2x1
jax: 0.10.0
libtpu: 0.0.40
codegen_flags: <defaults>
</compile_context>

<pallas_src>
import functools
import math

import numpy as np
import jax
import jax.numpy as jnp
from jax.experimental import pallas as pl
from jax.experimental.pallas import tpu as pltpu


def build_positional_encoding(seq_len: int, d_model: int) -> jnp.ndarray:
    """PE table matching the PyTorch __init__ exactly.

    Note: the module uses exponent 2*i/d_model for every column i (NOT the
    standard Transformer div_term over arange(0, d, 2)); we reproduce that.
    Built in float64 (like Python's math.sin on doubles) then cast to f32.
    """
    pos = np.arange(seq_len, dtype=np.float64)[:, None]          # (S, 1)
    i = np.arange(d_model, dtype=np.float64)[None, :]            # (1, D)
    angle = pos / np.power(10000.0, 2.0 * i / float(d_model))    # (S, D)
    even = (np.arange(d_model) % 2 == 0)[None, :]
    pe = np.where(even, np.sin(angle), np.cos(angle))
    return jnp.asarray(pe, dtype=jnp.float32)                    # (S, D)


def _pe_add_kernel(x_ref, pe_ref, o_ref, *, scale):
    # x_ref/o_ref: (TR, TC); pe_ref: (1, TC). Single fused VPU mul-add per vreg.
    o_ref[...] = x_ref[...] * scale + pe_ref[...]


def _pick_tiles(rows: int, cols: int):
    """Largest lane-dense tiles that stay within ~8 MiB double-buffered f32."""
    MAX_COLS = 8 * 1024          # column tile cap (multiple of 128)
    if cols <= MAX_COLS or cols % 128 != 0:
        tile_c = cols            # full extent: always layout-legal
    else:
        tile_c = MAX_COLS        # multiple of 128; Pallas masks the ragged tail

    MAX_ELEMS = 512 * 1024       # ~8 MiB with 2x(x)+2x(out) f32 double-buffering
    max_rows = max(1, MAX_ELEMS // tile_c)
    if rows <= max_rows:
        tile_r = rows            # full extent (legal even if < 8 sublanes)
    else:
        tile_r = max(8, (max_rows // 8) * 8)   # sublane-aligned
    return tile_r, tile_c


def positional_encoder(x: jnp.ndarray, pe: jnp.ndarray, d_model: int) -> jnp.ndarray:
    """x: (B, S, D); pe: (seq_len, D) with seq_len >= S. Returns (B, S, D)."""
    B, S, D = x.shape
    scale = math.sqrt(d_model)
    pe_used = pe[:S, :].astype(x.dtype)      # matches positional_encoding[:, :S]

    # Lane-dense layout: fold (S, D) into one axis of length S*D (256 here).
    rows, cols = B, S * D
    x2 = x.reshape(rows, cols)
    pe2 = pe_used.reshape(1, cols)

    tile_r, tile_c = _pick_tiles(rows, cols)
    grid = (pl.cdiv(rows, tile_r), pl.cdiv(cols, tile_c))

    out2 = pl.pallas_call(
        functools.partial(_pe_add_kernel, scale=scale),
        out_shape=jax.ShapeDtypeStruct((rows, cols), x.dtype),
        grid_spec=pltpu.PrefetchScalarGridSpec(
            num_scalar_prefetch=0,
            grid=grid,
            in_specs=[
                pl.BlockSpec((tile_r, tile_c), lambda i, j: (i, j)),  # x tile
                pl.BlockSpec((1, tile_c), lambda i, j: (0, j)),       # PE row
            ],
            out_specs=pl.BlockSpec((tile_r, tile_c), lambda i, j: (i, j)),
        ),
        compiler_params=pltpu.CompilerParams(
            dimension_semantics=("parallel", "parallel"),
        ),
    )(x2, pe2)
    return out2.reshape(B, S, D)


if __name__ == "__main__":
    # Small shapes consistent with the module: batch=2, seq=8, d_model=32.
    B, SEQ_LEN, D_MODEL = 2, 8, 32

    key = jax.random.PRNGKey(0)
    x = jax.random.normal(key, (B, SEQ_LEN, D_MODEL), dtype=jnp.float32)

    pe = build_positional_encoding(SEQ_LEN, D_MODEL)

    out = jax.block_until_ready(positional_encoder(x, pe, D_MODEL))

    # Reference check (plain JAX), mirrors the PyTorch forward.
    ref = x * math.sqrt(D_MODEL) + pe[None, :SEQ_LEN, :]
    assert out.shape == (B, SEQ_LEN, D_MODEL)
    assert jnp.allclose(out, ref, atol=1e-5, rtol=1e-5)

    print("KERNEL_OK")
</pallas_src>

<mosaic_0001>
module attributes {stable_mosaic.version = 11 : i64} {
  func.func @_pe_add_kernel(%arg0: i32, %arg1: i32, %arg2: memref<2x256xf32, #tpu.memory_space<vmem>>, %arg3: memref<1x256xf32, #tpu.memory_space<vmem>>, %arg4: memref<2x256xf32, #tpu.memory_space<vmem>>) attributes {dimension_semantics = [#tpu.dimension_semantics<parallel>, #tpu.dimension_semantics<parallel>], iteration_bounds = array<i64: 1, 1>, scalar_prefetch = 0 : i64, scratch_operands = 0 : i64, tpu.core_type = #tpu.core_type<tc>, window_params = [{transform_indices = @transform_0, window_bounds = array<i64: 2, 256>}, {transform_indices = @transform_1, window_bounds = array<i64: 1, 256>}, {transform_indices = @transform_2, window_bounds = array<i64: 2, 256>}]} {
    %c0 = arith.constant 0 : index
    %c0_0 = arith.constant 0 : index
    %0 = vector.load %arg2[%c0, %c0_0] : memref<2x256xf32, #tpu.memory_space<vmem>>, vector<2x256xf32>
    %cst = arith.constant 5.65685415 : f32
    %1 = vector.broadcast %cst : f32 to vector<2x256xf32>
    %2 = arith.mulf %0, %1 : vector<2x256xf32>
    %c0_1 = arith.constant 0 : index
    %c0_2 = arith.constant 0 : index
    %3 = vector.load %arg3[%c0_1, %c0_2] : memref<1x256xf32, #tpu.memory_space<vmem>>, vector<1x256xf32>
    %4 = vector.broadcast %3 : vector<1x256xf32> to vector<2x256xf32>
    %5 = arith.addf %2, %4 : vector<2x256xf32>
    %c0_3 = arith.constant 0 : index
    %c0_4 = arith.constant 0 : index
    %6 = vector.load %arg4[%c0_3, %c0_4] : memref<2x256xf32, #tpu.memory_space<vmem>>, vector<2x256xf32>
    tpu.vector_store %arg4[%c0_3, %c0_4], %5 {strides = array<i32>} : memref<2x256xf32, #tpu.memory_space<vmem>>, vector<2x256xf32>,
    return
  }
  func.func @transform_0(%arg0: i32, %arg1: i32) -> (i32, i32) {
    %c0_i32 = arith.constant 0 : i32
    return %arg0, %arg1 : i32, i32
  }
  func.func @transform_1(%arg0: i32, %arg1: i32) -> (i32, i32) {
    %c0_i32 = arith.constant 0 : i32
    %c0_i32_0 = arith.constant 0 : i32
    return %c0_i32, %arg1 : i32, i32
  }
  func.func @transform_2(%arg0: i32, %arg1: i32) -> (i32, i32) {
    %c0_i32 = arith.constant 0 : i32
    return %arg0, %arg1 : i32, i32
  }
}

</mosaic_0001>

<llo_original>
// kernel: tpu_custom_call.1
$region0: #{tpu_custom_call.1}
  #allocation0 [shape = 'u32[]', space=smem, size = 0x4, offset = 0x4, fixed_abs, tag = 'smem constant byte address 0x4 - core index']
  #allocation1 [shape = 'u32[144,128]{1,0:T(1,128)}', space=vmem, size = 0x12000, scoped, tag = 'internal scratch']
  %s0 = inlined_call_operand.hbm [shape: f32[2,256], index: 0, kind: input, shape index: {}]
  %s1 = inlined_call_operand.vmem [shape: f32[1,256], index: 1, kind: input, shape index: {}]
  %s2 = inlined_call_operand.hbm [shape: f32[2,256], index: 2, kind: output, shape index: {}]
  %s3 = sld [smem:[#allocation0]]
  $region22: #{tpu_custom_call.1} parent=0
    _
  %s5 = ssub.s32 1, %s3
  %s6 = scalar_select 0, %s5, %s3
  $region1: #{tpu_custom_call.1} parent=0
    #allocation2 [shape = 'u8[2048]{0}', space=vmem, size = 0x800, scoped, tag = 'input window, operand 0, single buffered']
    #allocation3 [shape = 's32[1]{0}', space=sflag, size = 0x4, scoped, tag = 'scoped memory for tpu_custom_call.1']
    #allocation4 [shape = 's32[1]{0}', space=sflag, size = 0x4, scoped, tag = 'scoped memory for tpu_custom_call.1']
    #allocation5 [shape = 'u8[2048]{0}', space=vmem, size = 0x800, scoped, tag = 'output window, operand 0, single buffered']
    %7 = vsyncpa [#allocation3], 0
    %8 = vsyncpa [#allocation4], 0
    // Predicated region
    $region2: #{tpu_custom_call.1} parent=1 // pred_check
      _
    $region3: #{tpu_custom_call.1} parent=1 // pred_check_branch
      %10 = sbr.rel (0) target = $region5
    $region4: #{tpu_custom_call.1} parent=1 // pred_region
      %s12 = ssub.s32 64, 64
      %13 = vsyncadd [#allocation3], %s12
      %s15 = sshll.u32 [#allocation2], 4
      %s16 = int_to_ptr.vmem [resolvable:$true] %s15
      %18 = dma.hbm_to_vmem [thread:$0]  %s0, 64, %s16, [#allocation3]
    $region5: #{tpu_custom_call.1} parent=1 // pred_fallthru
      _
    // Predicated region
    $region6: #{tpu_custom_call.1} parent=1 // pred_check
      _
    $region7: #{tpu_custom_call.1} parent=1 // pred_check_branch
      %20 = sbr.rel (0) target = $region9
    $region8: #{tpu_custom_call.1} parent=1 // pred_region
      _
    $region9: #{tpu_custom_call.1} parent=1 // pred_fallthru
      _
    // Predicated region
    $region10: #{tpu_custom_call.1} parent=1 // pred_check
      _
    $region11: #{tpu_custom_call.1} parent=1 // pred_check_branch
      %22 = sbr.rel (0) target = $region13
    $region12: #{tpu_custom_call.1} parent=1 // pred_region
      %23 = dma.done [#allocation3], 64
    $region13: #{tpu_custom_call.1} parent=1 // pred_fallthru
      _
    %v24 = vld [vmem:[#allocation2] sm:$0xf]
    %v25 = vmul.f32 %v24, 5.656854
    %v26 = vld [vmem:[%s1] sm:$0x3]
    %v28 = vlaneseq
    %v29 = vshrl.u32 %v28, 7
    %v30 = vsub.s32 0, %v29
    %v31 = vrot.slane %v26, %v30
    %v32 = vlaneseq
    %v33 = vshrl.u32 %v32, 7
    %v34 = vsub.s32 1, %v33
    %v35 = vrot.slane %v26, %v34
    %v36 = vcombine.low %v31, %v35
    %v38 = vunpack.c.l.s4 1983009808
    %v39 = vunpack.c.0.s8 %v38
    %v40 = vlaneseq
    %v41 = vshrl.u32 %v40, 7
    %v42 = vsub.s32 %v39, %v41
    %v43 = vrot.slane %v36, %v42
    %v45 = vadd.f32 %v25, %v43
    %46 = vst [vmem:[#allocation5] sm:$0xf] %v45
    // Predicated region
    $region14: #{tpu_custom_call.1} parent=1 // pred_check
      _
    $region15: #{tpu_custom_call.1} parent=1 // pred_check_branch
      %48 = sbr.rel (0) target = $region17
    $region16: #{tpu_custom_call.1} parent=1 // pred_region
      %s50 = ssub.s32 64, 64
      %51 = vsyncadd [#allocation4], %s50
      %s53 = sshll.u32 [#allocation5], 4
      %s54 = int_to_ptr.vmem [resolvable:$true] %s53
      %56 = dma.vmem_to_hbm [thread:$0]  %s54, 64, %s2, [#allocation4]
    $region17: #{tpu_custom_call.1} parent=1 // pred_fallthru
      _
    // Predicated region
    $region18: #{tpu_custom_call.1} parent=1 // pred_check
      _
    $region19: #{tpu_custom_call.1} parent=1 // pred_check_branch
      %58 = sbr.rel (0) target = $region21
    $region20: #{tpu_custom_call.1} parent=1 // pred_region
      %59 = dma.done [#allocation4], 64
    $region21: #{tpu_custom_call.1} parent=1 // pred_fallthru
      _
    %60 = vsyncpa [#allocation3], 1
    %61 = vsyncpa [#allocation4], 1

</llo_original>
